<compile_context>
chip_gen: v7x
topology: tpu7x:2x2x1
jax: 0.10.0
libtpu: 0.0.40
codegen_flags: <defaults>
</compile_context>

<pallas_src>
import functools

import jax
import jax.numpy as jnp
from jax.experimental import pallas as pl
from jax.experimental.pallas import tpu as pltpu


# --------------------------------------------------------------------------------------
# tiling helper: largest lane tile (multiple of 128) that divides n, capped at max_tile.
# --------------------------------------------------------------------------------------
def _pick_tile(n, max_tile):
    if n <= max_tile:
        return n
    if n % 128 != 0:
        return n                       # fallback: full block (only hits odd shapes)
    t = (max_tile // 128) * 128
    while t >= 128:
        if n % t == 0:
            return t
        t -= 128
    return n


# --------------------------------------------------------------------------------------
# Pallas kernel 1: 1x1 conv, pixels-on-lanes, Cin=3 -> VPU broadcast-FMAs (no MXU)
# --------------------------------------------------------------------------------------
def _conv1x1_kernel(x_ref, w_ref, b_ref, o_ref, *, cin, relu):
    x = x_ref[...]                                        # (cin, TN) pixels on lanes
    w = w_ref[...]                                        # (cout, cin)
    acc = w[:, 0:1] * x[0:1, :]
    for k in range(1, cin):                               # static loop (cin == 3)
        acc = acc + w[:, k:k + 1] * x[k:k + 1, :]
    y = acc + b_ref[...]
    if relu:
        y = jnp.maximum(y, 0.0)
    o_ref[...] = y.astype(o_ref.dtype)


def conv1x1(x, w, b, relu=True):
    """x: (B, Cin, Npix); w: (Cout, Cin); b: (Cout, 1) -> (B, Cout, Npix)."""
    B, Cin, Npix = x.shape
    Cout = w.shape[0]
    TN = _pick_tile(Npix, 2048)
    NT = Npix // TN
    return pl.pallas_call(
        functools.partial(_conv1x1_kernel, cin=Cin, relu=relu),
        out_shape=jax.ShapeDtypeStruct((B, Cout, Npix), jnp.float32),
        grid_spec=pltpu.PrefetchScalarGridSpec(
            num_scalar_prefetch=0,
            grid=(B, NT),
            in_specs=[
                pl.BlockSpec((None, Cin, TN), lambda b_, t: (b_, 0, t)),
                pl.BlockSpec((Cout, Cin), lambda b_, t: (0, 0)),
                pl.BlockSpec((Cout, 1), lambda b_, t: (0, 0)),
            ],
            out_specs=pl.BlockSpec((None, Cout, TN), lambda b_, t: (b_, 0, t)),
        ),
        compiler_params=pltpu.CompilerParams(
            dimension_semantics=("parallel", "parallel")),
    )(x, w, b)


# --------------------------------------------------------------------------------------
# Pallas kernel 2: fused per-depth cost variance + regularization MLP + soft-argmax
#   grid = (B, pixel_tiles, D); depth is the innermost ("arbitrary") reduction axis,
#   accumulators live in VMEM scratch across depth steps (P3), pixel tiles are "parallel".
# --------------------------------------------------------------------------------------
def _make_cost_kernel(num_src, num_views):
    inv_v = 1.0 / float(num_views)

    def kernel(*args):
        ref_ref = args[0]
        depth_ref = args[1]
        warped_refs = args[2:2 + num_src]
        w1_ref = args[2 + num_src]
        b1_ref = args[3 + num_src]
        w2_ref = args[4 + num_src]
        b2_ref = args[5 + num_src]
        depth_out_ref = args[6 + num_src]
        prob_out_ref = args[7 + num_src]
        ref_sq_sc, m_sc, exp_sum_sc, depth_img_sc, max_prob_sc = args[8 + num_src:]

        d = pl.program_id(2)
        ref = ref_ref[...]                                 # (C, TN) pixels on lanes

        @pl.when(d == 0)
        def _init():
            ref_sq_sc[...] = ref * ref                     # hoisted: constant over depth
            m_sc[...] = jnp.full(m_sc.shape, -jnp.inf, m_sc.dtype)
            exp_sum_sc[...] = jnp.zeros(exp_sum_sc.shape, exp_sum_sc.dtype)
            depth_img_sc[...] = jnp.zeros(depth_img_sc.shape, depth_img_sc.dtype)
            max_prob_sc[...] = jnp.zeros(max_prob_sc.shape, max_prob_sc.dtype)

        vol_sum = ref
        vol_sq = ref_sq_sc[...]
        for wref in warped_refs:                           # static python loop over src views
            wv = wref[...]                                 # (C, TN)
            vol_sum = vol_sum + wv
            vol_sq = vol_sq + wv * wv
        mean = vol_sum * inv_v
        var = vol_sq * inv_v - mean * mean                 # variance cost volume (C, TN)

        # surrogate cost regularization: per-pixel MLP C -> Hc -> 1 (pixels stay on lanes)
        h = jnp.dot(w1_ref[...], var, preferred_element_type=jnp.float32) + b1_ref[...]
        h = jnp.maximum(h, 0.0)                                                   # (Hc, TN)
        cost = jnp.sum(w2_ref[...] * h, axis=0, keepdims=True) + b2_ref[0, 0]     # (1, TN)

        depth_d = depth_ref[...]                           # (1, TN) per-pixel hypothesis

        # online running-max rescaling: numerically safe, mathematically identical to
        # exp_sum/depth_image/max_prob accumulation of the reference.
        m_prev = m_sc[...]
        m_new = jnp.maximum(m_prev, cost)
        alpha = jnp.exp(m_prev - m_new)
        p = jnp.exp(cost - m_new)
        exp_sum_sc[...] = alpha * exp_sum_sc[...] + p
        depth_img_sc[...] = alpha * depth_img_sc[...] + depth_d * p
        max_prob_sc[...] = jnp.maximum(alpha * max_prob_sc[...], p)
        m_sc[...] = m_new

        @pl.when(d == pl.num_programs(2) - 1)
        def _finalize():
            # reference adds 1e-10 in un-rescaled space: exp(-m) converts it.
            denom = exp_sum_sc[...] + 1e-10 * jnp.exp(-m_sc[...])
            inv = pl.reciprocal(denom, approx=True)
            depth_out_ref[...] = (depth_img_sc[...] * inv).astype(depth_out_ref.dtype)
            prob_out_ref[...] = (max_prob_sc[...] * inv).astype(prob_out_ref.dtype)

    return kernel


def cost_aggregation(ref_flat, depth_flat, warped_list, w1, b1, w2, b2, num_views):
    """ref_flat: (B, C, HW); depth_flat: (B, D, 1, HW); warped_list: S arrays (B, D, C, HW)."""
    B, C, HW = ref_flat.shape
    D = depth_flat.shape[1]
    S = len(warped_list)
    Hc = w1.shape[0]
    TN = _pick_tile(HW, 4096)
    NT = HW // TN

    in_specs = [
        pl.BlockSpec((None, C, TN), lambda b, nt, d: (b, 0, nt)),            # ref feature
        pl.BlockSpec((None, None, 1, TN), lambda b, nt, d: (b, d, 0, nt)),   # depth hypotheses
    ]
    for _ in range(S):                                                       # warped src views
        in_specs.append(pl.BlockSpec((None, None, C, TN),
                                     lambda b, nt, d: (b, d, 0, nt)))
    in_specs += [
        pl.BlockSpec((Hc, C), lambda b, nt, d: (0, 0)),                      # w1
        pl.BlockSpec((Hc, 1), lambda b, nt, d: (0, 0)),                      # b1
        pl.BlockSpec((Hc, 1), lambda b, nt, d: (0, 0)),                      # w2
        pl.BlockSpec(memory_space=pltpu.MemorySpace.SMEM),                   # b2 scalar in SMEM
    ]
    out_specs = [
        pl.BlockSpec((None, 1, TN), lambda b, nt, d: (b, 0, nt)),
        pl.BlockSpec((None, 1, TN), lambda b, nt, d: (b, 0, nt)),
    ]

    return pl.pallas_call(
        _make_cost_kernel(S, num_views),
        out_shape=(jax.ShapeDtypeStruct((B, 1, HW), jnp.float32),
                   jax.ShapeDtypeStruct((B, 1, HW), jnp.float32)),
        grid_spec=pltpu.PrefetchScalarGridSpec(
            num_scalar_prefetch=0,
            grid=(B, NT, D),                        # depth = innermost reduction axis
            in_specs=in_specs,
            out_specs=out_specs,
            scratch_shapes=[
                pltpu.VMEM((C, TN), jnp.float32),   # ref^2 (hoisted, constant over depth)
                pltpu.VMEM((1, TN), jnp.float32),   # running max of cost
                pltpu.VMEM((1, TN), jnp.float32),   # exp_sum (rescaled)
                pltpu.VMEM((1, TN), jnp.float32),   # depth_image (rescaled)
                pltpu.VMEM((1, TN), jnp.float32),   # max_prob_image (rescaled)
            ],
        ),
        compiler_params=pltpu.CompilerParams(
            dimension_semantics=("parallel", "parallel", "arbitrary"),
            vmem_limit_bytes=32 * 1024 * 1024,
        ),
    )(ref_flat, depth_flat, *warped_list, w1, b1, w2, b2)


# --------------------------------------------------------------------------------------
# JAX glue: homography warping, producing (B, D, C, H*W) directly (no volume transpose)
# --------------------------------------------------------------------------------------
def homo_warping(src_fea, src_proj, ref_proj, depth_values):
    """src_fea: (B,C,H,W) channels-first; src_proj/ref_proj: (B,4,4); depth_values: (B,D,H,W).
    Returns (B, D, C, H*W) -- exactly the layout the cost kernel consumes."""
    # TODO(synk): gather-heavy grid_sample has no clean Pallas equivalent; kept in plain JAX.
    B, C, H, W = src_fea.shape
    D = depth_values.shape[1]
    proj = src_proj @ jnp.linalg.inv(ref_proj)
    rot = proj[:, :3, :3]
    trans = proj[:, :3, 3]
    yy, xx = jnp.meshgrid(jnp.arange(H, dtype=jnp.float32),
                          jnp.arange(W, dtype=jnp.float32), indexing="ij")
    xyz = jnp.stack([xx.ravel(), yy.ravel(), jnp.ones(H * W, jnp.float32)], axis=0)   # (3, HW)
    rot_xyz = jnp.einsum("bij,jn->bin", rot, xyz)                                      # (B,3,HW)
    dvals = depth_values.reshape(B, D, H * W)
    proj_xyz = rot_xyz[:, None] * dvals[:, :, None, :] + trans[:, None, :, None]       # (B,D,3,HW)
    z = proj_xyz[:, :, 2]
    px = proj_xyz[:, :, 0] / z
    py = proj_xyz[:, :, 1] / z
    src_flat = src_fea.reshape(B, C, H * W)

    def sample_batch(src_cf, px_b, py_b):          # (C,HW), (D,HW), (D,HW)
        def sample_depth(px_d, py_d):              # (HW,), (HW,)
            x0 = jnp.floor(px_d)
            y0 = jnp.floor(py_d)
            x1 = x0 + 1.0
            y1 = y0 + 1.0
            wx1 = px_d - x0
            wy1 = py_d - y0
            wx0 = 1.0 - wx1
            wy0 = 1.0 - wy1

            def g(xi, yi):
                valid = (xi >= 0) & (xi <= W - 1) & (yi >= 0) & (yi <= H - 1)
                xc = jnp.clip(xi, 0, W - 1).astype(jnp.int32)
                yc = jnp.clip(yi, 0, H - 1).astype(jnp.int32)
                vals = src_cf[:, yc * W + xc]                       # (C, HW)
                return vals * valid.astype(src_cf.dtype)[None, :]

            return (g(x0, y0) * (wx0 * wy0)[None]
                    + g(x1, y0) * (wx1 * wy0)[None]
                    + g(x0, y1) * (wx0 * wy1)[None]
                    + g(x1, y1) * (wx1 * wy1)[None])                # (C, HW)

        return jax.vmap(sample_depth)(px_b, py_b)                   # (D, C, HW)

    return jax.vmap(sample_batch)(src_flat, px, py)                 # (B, D, C, HW)


# --------------------------------------------------------------------------------------
# Depth-range sampling glue (CasMVSNet style)
# --------------------------------------------------------------------------------------
def get_depth_range_samples(cur_depth, ndepth, depth_interval_pixel, shape):
    # TODO(synk): original get_depth_range_samples source not provided; standard CasMVSNet form.
    if cur_depth.ndim == 2:                                 # (B, D) initial hypotheses
        dmin = cur_depth[:, 0]
        dmax = cur_depth[:, -1]
        new_interval = (dmax - dmin) / (ndepth - 1)
        samples = dmin[:, None] + jnp.arange(ndepth, dtype=jnp.float32)[None] * new_interval[:, None]
        return samples[:, :, None, None] * jnp.ones((1, 1, shape[1], shape[2]), jnp.float32)
    else:                                                   # (B, H, W) depth map
        dmin = cur_depth - ndepth / 2.0 * depth_interval_pixel
        dmax = cur_depth + ndepth / 2.0 * depth_interval_pixel
        new_interval = (dmax - dmin) / (ndepth - 1)
        return dmin[:, None] + (jnp.arange(ndepth, dtype=jnp.float32).reshape(1, -1, 1, 1)
                                * new_interval[:, None])


# --------------------------------------------------------------------------------------
# Surrogate FeatureNet (original UNet FeatureNet definition not available here)
# --------------------------------------------------------------------------------------
class SurrogateFeatureNet:
    # TODO(synk): original FeatureNet(base_channels=8, stride=4, arch_mode='unet') unavailable;
    # deterministic surrogate: stage-wise avg-pool + Pallas 1x1-conv (VPU FMAs) + ReLU,
    # keeping the out_channels [32, 16, 8], stage resolutions [H/4, H/2, H] and
    # channels-first layout so no NHWC transposes are needed anywhere downstream.
    out_channels = [32, 16, 8]
    strides = [4, 2, 1]

    def __init__(self, key):
        ks = jax.random.split(key, len(self.out_channels))
        self.params = []
        for i, cout in enumerate(self.out_channels):
            w = 0.3 * jax.random.normal(ks[i], (cout, 3), jnp.float32)
            b = 0.01 * jnp.ones((cout, 1), jnp.float32)
            self.params.append((w, b))

    def __call__(self, img_nchw):                           # (B, 3, H, W)
        x = img_nchw.astype(jnp.float32)
        B, _, H, W = x.shape
        feats = {}
        for i, s in enumerate(self.strides):
            if s > 1:
                xp = x.reshape(B, 3, H // s, s, W // s, s).mean(axis=(3, 5))
            else:
                xp = x
            Hs, Ws = H // s, W // s
            w, b = self.params[i]
            f = conv1x1(xp.reshape(B, 3, Hs * Ws), w, b, relu=True)     # (B, Cout, Hs*Ws)
            feats["stage{}".format(i + 1)] = f.reshape(B, self.out_channels[i], Hs, Ws)
        return feats


# --------------------------------------------------------------------------------------
# compute_depth_when_pred (the hot path is inside the Pallas cost_aggregation kernel)
# --------------------------------------------------------------------------------------
def compute_depth_when_pred(features, proj_matrices, depth_values, num_depth,
                            reg_params, num_views):
    """features: list of V channels-first maps (B,C,Hs,Ws); proj_matrices: (B,V,4,4);
    depth_values: (B, num_depth, Hs, Ws)."""
    assert depth_values.shape[1] == num_depth
    ref_feature = features[0]
    src_features = features[1:]
    ref_proj = proj_matrices[:, 0]
    B, C, Hs, Ws = ref_feature.shape
    HW = Hs * Ws

    # one warped volume per source view, already in (B, D, C, HW) -- no stack / transpose.
    warped_list = [homo_warping(src_features[i], proj_matrices[:, i + 1], ref_proj,
                                depth_values)
                   for i in range(num_views - 1)]

    ref_flat = ref_feature.reshape(B, C, HW)                     # free reshape
    depth_flat = depth_values.reshape(B, num_depth, 1, HW)       # free reshape

    w1, b1, w2, b2 = reg_params
    depth_out, prob_out = cost_aggregation(ref_flat, depth_flat, warped_list,
                                           w1, b1, w2, b2, num_views)
    # NOTE: torch accumulates in float64; TPU kernel accumulates in float32 with an online
    #       running-max rescaling (mathematically identical soft-argmax, overflow-safe).
    return {"depth": depth_out.reshape(B, Hs, Ws),
            "photometric_confidence": prob_out.reshape(B, Hs, Ws)}


# --------------------------------------------------------------------------------------
# The cascade model
# --------------------------------------------------------------------------------------
class InferCascadeREDNetPallas:
    def __init__(self, geo_model="pinhole", min_interval=2.5, ndepths=(8, 4, 4),
                 depth_interals_ratio=(4, 2, 1), cr_base_chs=(8, 8, 8)):
        assert geo_model in ("rpc", "pinhole")
        # TODO(synk): geo_model == 'rpc' (rpc_warping + 20-coef polynomial) not implemented.
        self.geo_model = geo_model
        self.ndepths = list(ndepths)
        self.ratios = list(depth_interals_ratio)
        self.min_interval = min_interval
        self.num_stage = len(ndepths)
        assert len(ndepths) == len(depth_interals_ratio)
        self.stage_scales = [4.0, 2.0, 1.0] if self.num_stage == 3 else [4.0, 1.0]

        key = jax.random.PRNGKey(42)
        kf, kr = jax.random.split(key)
        self.feature = SurrogateFeatureNet(kf)

        # TODO(synk): original slice_RED_Regularization (recurrent encoder-decoder with
        # state1..state4 ConvGRUs) unavailable; deterministic surrogate per-pixel MLP
        # (C -> base -> 1) fused into the Pallas cost-aggregation kernel; states not carried.
        self.reg_params = []
        ks = jax.random.split(kr, self.num_stage)
        for i in range(self.num_stage):
            cin = self.feature.out_channels[i]
            base = cr_base_chs[i]
            k1, k2 = jax.random.split(ks[i])
            w1 = 0.2 * jax.random.normal(k1, (base, cin), jnp.float32)
            b1 = jnp.zeros((base, 1), jnp.float32)
            w2 = 0.2 * jax.random.normal(k2, (base, 1), jnp.float32)
            b2 = jnp.zeros((1, 1), jnp.float32)
            self.reg_params.append((w1, b1, w2, b2))

    def __call__(self, imgs, proj_matrices, depth_values):
        # imgs: (B, V, 3, H, W) NCHW (PyTorch layout); kept channels-first throughout.
        B, V = int(imgs.shape[0]), int(imgs.shape[1])
        H, W = int(imgs.shape[3]), int(imgs.shape[4])

        features = [self.feature(imgs[:, v]) for v in range(V)]

        outputs = {}
        depth = None
        for stage_idx in range(self.num_stage):
            feats = [f["stage{}".format(stage_idx + 1)] for f in features]
            projs = proj_matrices["stage{}".format(stage_idx + 1)]
            scale = int(self.stage_scales[stage_idx])
            nd = self.ndepths[stage_idx]

            if depth is not None:
                cur_depth = jax.image.resize(depth, (B, H, W), method="linear")
            else:
                cur_depth = depth_values

            drs = get_depth_range_samples(cur_depth, nd,
                                          self.ratios[stage_idx] * self.min_interval,
                                          (B, H, W))                               # (B,nd,H,W)
            dv = jax.image.resize(drs, (B, nd, H // scale, W // scale), method="linear")

            out_stage = compute_depth_when_pred(feats, projs, dv, nd,
                                                self.reg_params[stage_idx], V)
            depth = out_stage["depth"]
            outputs["stage{}".format(stage_idx + 1)] = out_stage
            outputs.update(out_stage)
        return outputs


# --------------------------------------------------------------------------------------
# Test harness
# --------------------------------------------------------------------------------------
def make_proj_matrices(B, V, H, W, scales=(4, 2, 1)):
    projs = {}
    f = float(W)
    for si, s in enumerate(scales):
        mats = []
        for v in range(V):
            K = jnp.array([[f / s, 0.0, (W / s) / 2.0, 0.0],
                           [0.0, f / s, (H / s) / 2.0, 0.0],
                           [0.0, 0.0, 1.0, 0.0],
                           [0.0, 0.0, 0.0, 1.0]], jnp.float32)
            E = jnp.eye(4, dtype=jnp.float32).at[0, 3].set(0.1 * v)   # small x baseline
            mats.append(K @ E)
        proj = jnp.stack(mats, 0)
        projs["stage{}".format(si + 1)] = jnp.broadcast_to(proj[None], (B, V, 4, 4))
    return projs


if __name__ == "__main__":
    key = jax.random.PRNGKey(0)
    B, V, H, W = 2, 3, 16, 16
    ndepths = [8, 4, 4]

    imgs = jax.random.uniform(key, (B, V, 3, H, W), jnp.float32)
    depth_values = jnp.broadcast_to(
        jnp.linspace(4.0, 12.0, ndepths[0], dtype=jnp.float32)[None], (B, ndepths[0]))
    proj_matrices = make_proj_matrices(B, V, H, W)

    model = InferCascadeREDNetPallas(geo_model="pinhole", min_interval=2.5,
                                     ndepths=ndepths, depth_interals_ratio=[4, 2, 1],
                                     cr_base_chs=[8, 8, 8])
    outputs = model(imgs, proj_matrices, depth_values)
    outputs = jax.block_until_ready(outputs)

    assert outputs["depth"].shape == (B, H, W)
    assert outputs["photometric_confidence"].shape == (B, H, W)
    assert outputs["stage1"]["depth"].shape == (B, H // 4, W // 4)
    assert bool(jnp.all(jnp.isfinite(outputs["depth"])))
    print("KERNEL_OK")
</pallas_src>

<mosaic_0001>
module attributes {stable_mosaic.version = 11 : i64} {
  func.func @_conv1x1_kernel(%arg0: i32, %arg1: i32, %arg2: memref<1x3x16xf32, #tpu.memory_space<vmem>>, %arg3: memref<32x3xf32, #tpu.memory_space<vmem>>, %arg4: memref<32x1xf32, #tpu.memory_space<vmem>>, %arg5: memref<1x32x16xf32, #tpu.memory_space<vmem>>) attributes {dimension_semantics = [#tpu.dimension_semantics<parallel>, #tpu.dimension_semantics<parallel>], iteration_bounds = array<i64: 2, 1>, scalar_prefetch = 0 : i64, scratch_operands = 0 : i64, tpu.core_type = #tpu.core_type<tc>, window_params = [{transform_indices = @transform_0, window_bounds = array<i64: 1, 3, 16>}, {pipeline_mode = #tpu.pipeline_mode<synchronous>, transform_indices = @transform_1, window_bounds = array<i64: 32, 3>}, {pipeline_mode = #tpu.pipeline_mode<synchronous>, transform_indices = @transform_2, window_bounds = array<i64: 32, 1>}, {transform_indices = @transform_3, window_bounds = array<i64: 1, 32, 16>}]} {
    %c0 = arith.constant 0 : index
    %c0_0 = arith.constant 0 : index
    %c0_1 = arith.constant 0 : index
    %0 = vector.load %arg2[%c0, %c0_0, %c0_1] : memref<1x3x16xf32, #tpu.memory_space<vmem>>, vector<1x3x16xf32>
    %1 = vector.shape_cast %0 : vector<1x3x16xf32> to vector<3x16xf32>
    %c0_2 = arith.constant 0 : index
    %c0_3 = arith.constant 0 : index
    %2 = vector.load %arg3[%c0_2, %c0_3] : memref<32x3xf32, #tpu.memory_space<vmem>>, vector<32x3xf32>
    %3 = vector.extract_strided_slice %2 {offsets = [0, 0], sizes = [32, 1], strides = [1, 1]} : vector<32x3xf32> to vector<32x1xf32>
    %4 = vector.extract_strided_slice %1 {offsets = [0, 0], sizes = [1, 16], strides = [1, 1]} : vector<3x16xf32> to vector<1x16xf32>
    %5 = vector.broadcast %3 : vector<32x1xf32> to vector<32x16xf32>
    %6 = vector.broadcast %4 : vector<1x16xf32> to vector<32x16xf32>
    %7 = arith.mulf %5, %6 : vector<32x16xf32>
    %8 = vector.extract_strided_slice %2 {offsets = [0, 1], sizes = [32, 1], strides = [1, 1]} : vector<32x3xf32> to vector<32x1xf32>
    %9 = vector.extract_strided_slice %1 {offsets = [1, 0], sizes = [1, 16], strides = [1, 1]} : vector<3x16xf32> to vector<1x16xf32>
    %10 = vector.broadcast %8 : vector<32x1xf32> to vector<32x16xf32>
    %11 = vector.broadcast %9 : vector<1x16xf32> to vector<32x16xf32>
    %12 = arith.mulf %10, %11 : vector<32x16xf32>
    %13 = arith.addf %7, %12 : vector<32x16xf32>
    %14 = vector.extract_strided_slice %2 {offsets = [0, 2], sizes = [32, 1], strides = [1, 1]} : vector<32x3xf32> to vector<32x1xf32>
    %15 = vector.extract_strided_slice %1 {offsets = [2, 0], sizes = [1, 16], strides = [1, 1]} : vector<3x16xf32> to vector<1x16xf32>
    %16 = vector.broadcast %14 : vector<32x1xf32> to vector<32x16xf32>
    %17 = vector.broadcast %15 : vector<1x16xf32> to vector<32x16xf32>
    %18 = arith.mulf %16, %17 : vector<32x16xf32>
    %19 = arith.addf %13, %18 : vector<32x16xf32>
    %c0_4 = arith.constant 0 : index
    %c0_5 = arith.constant 0 : index
    %20 = vector.load %arg4[%c0_4, %c0_5] : memref<32x1xf32, #tpu.memory_space<vmem>>, vector<32x1xf32>
    %21 = vector.broadcast %20 : vector<32x1xf32> to vector<32x16xf32>
    %22 = arith.addf %19, %21 : vector<32x16xf32>
    %cst = arith.constant 0.000000e+00 : f32
    %23 = vector.broadcast %cst : f32 to vector<32x16xf32>
    %24 = arith.maximumf %22, %23 : vector<32x16xf32>
    %c0_6 = arith.constant 0 : index
    %c0_7 = arith.constant 0 : index
    %c0_8 = arith.constant 0 : index
    %25 = vector.load %arg5[%c0_6, %c0_7, %c0_8] : memref<1x32x16xf32, #tpu.memory_space<vmem>>, vector<1x32x16xf32>
    %26 = vector.shape_cast %25 : vector<1x32x16xf32> to vector<32x16xf32>
    %27 = vector.shape_cast %24 : vector<32x16xf32> to vector<1x32x16xf32>
    tpu.vector_store %arg5[%c0_6, %c0_7, %c0_8], %27 {strides = array<i32>} : memref<1x32x16xf32, #tpu.memory_space<vmem>>, vector<1x32x16xf32>,
    return
  }
  func.func @transform_0(%arg0: i32, %arg1: i32) -> (i32, i32, i32) {
    %c0_i32 = arith.constant 0 : i32
    %c0_i32_0 = arith.constant 0 : i32
    return %arg0, %c0_i32, %arg1 : i32, i32, i32
  }
  func.func @transform_1(%arg0: i32, %arg1: i32) -> (i32, i32) {
    %c0_i32 = arith.constant 0 : i32
    %c0_i32_0 = arith.constant 0 : i32
    %c0_i32_1 = arith.constant 0 : i32
    return %c0_i32, %c0_i32_0 : i32, i32
  }
  func.func @transform_2(%arg0: i32, %arg1: i32) -> (i32, i32) {
    %c0_i32 = arith.constant 0 : i32
    %c0_i32_0 = arith.constant 0 : i32
    %c0_i32_1 = arith.constant 0 : i32
    return %c0_i32, %c0_i32_0 : i32, i32
  }
  func.func @transform_3(%arg0: i32, %arg1: i32) -> (i32, i32, i32) {
    %c0_i32 = arith.constant 0 : i32
    %c0_i32_0 = arith.constant 0 : i32
    return %arg0, %c0_i32, %arg1 : i32, i32, i32
  }
}

</mosaic_0001>

<llo_original>
// kernel: tpu_custom_call.1
$region0: #{tpu_custom_call.1}
  #allocation0 [shape = 'u32[]', space=smem, size = 0x4, offset = 0x4, fixed_abs, tag = 'smem constant byte address 0x4 - core index']
  #allocation1 [shape = 'u32[144,128]{1,0:T(1,128)}', space=vmem, size = 0x12000, scoped, tag = 'internal scratch']
  %s0 = inlined_call_operand.vmem [shape: f32[2,3,16], index: 0, kind: input, shape index: {}]
  %s1 = inlined_call_operand.vmem [shape: f32[32,3], index: 1, kind: input, shape index: {}]
  %s2 = inlined_call_operand.vmem [shape: f32[32,1], index: 2, kind: input, shape index: {}]
  %s3 = inlined_call_operand.vmem [shape: f32[2,32,16], index: 3, kind: output, shape index: {}]
  %s4 = sld [smem:[#allocation0]]
  $region45: #{tpu_custom_call.1} parent=0
    _
  %s6 = ssub.s32 1, %s4
  %s7 = scalar_select 0, %s6, %s4
  loop: start=0, step=1, limit=4
  $region2: #{tpu_custom_call.1} parent=0 // loop_pre_header
    _
  $region3: #{tpu_custom_call.1} parent=0 // loop_header
    %s9 = sphi 0, %s13
    %p10 = scmp.ge.s32.totalorder %s9, 4
    %s16 = sphi 0, %s28
    %s17 = sphi 0, %s24
    %s18 = sphi 0, %s16
    %s19 = sphi 0, %s17
    %s20 = sphi 0, %s18
    %s21 = sphi 0, %s19
    %s33 = sphi 0, %s35
    %s36 = sphi 0, %s33
    %s37 = sphi 0, %s36
    %s53 = sphi 0, %s37
    %s57 = sphi 0, %s57
    %s59 = sphi 0, %s57
    %s60 = sphi 0, %s59
    %s74 = sphi 0, %s60
    %s78 = sphi 0, %s78
    %s80 = sphi 0, %s78
    %s81 = sphi 0, %s80
    %s95 = sphi 0, %s81
    %s103 = sphi 0, %s105
    %s106 = sphi 0, %s103
    %s107 = sphi 0, %s106
    %s123 = sphi 0, %s107
  $region4: #{tpu_custom_call.1} parent=0 // loop_header_branch
    %12 = sbr.rel (%p10) target = $region8
  $region5: #{tpu_custom_call.1} parent=0 // loop_body
    %s14 = ssub.s32 %s9, 1
    %s15 = ssub.s32 %s9, 2
    %s22 = sadd.s32 1, %s17
    %p23 = scmp.ge.s32.totalorder %s22, 1
    %s24 = scalar_select %p23, 0, %s22
    %s25 = sadd.s32 1, %s16
    %s26 = scalar_select %p23, %s25, %s16
    %p27 = scmp.ge.s32.totalorder %s26, 2
    %s28 = scalar_select %p27, 0, %s26
    %s29 = ssub.s32 %s16, %s28
    %s30 = ssub.s32 %s17, %s24
    %s31 = sor.u32 %s29, %s30
    %p32 = scmp.eq.s32.totalorder %s31, 0
    %s34 = sadd.s32 %s33, 1
    %s35 = scalar_select %p32, %s33, %s34
    %p38 = pneg %p32
    %p39 = scmp.eq.s32.totalorder %s9, 1
    %p40 = por %p38, %p39
    %p41 = scmp.ne.s32.totalorder %s33, %s36
    %p42 = scmp.eq.s32.totalorder %s9, 0
    %p43 = por %p41, %p42
    %p44 = scmp.ne.s32.totalorder %s33, %s36
    %p45 = scmp.eq.s32.totalorder %s14, 1
    %p46 = por %p44, %p45
    %p47 = scmp.ne.s32.totalorder %s36, %s37
    %p48 = scmp.eq.s32.totalorder %s14, 0
    %p49 = por %p47, %p48
    %p50 = scmp.ne.s32.totalorder %s36, %s37
    %p51 = scmp.eq.s32.totalorder %s15, 1
    %p52 = por %p50, %p51
    %p54 = scmp.ne.s32.totalorder %s37, %s53
    %p55 = scmp.eq.s32.totalorder %s15, 0
    %p56 = por %p54, %p55
    %s58 = sadd.s32 %s57, 1
    %p61 = scmp.eq.s32.totalorder %s9, 1
    %p62 = scmp.ne.s32.totalorder %s57, %s59
    %p63 = scmp.eq.s32.totalorder %s9, 0
    %p64 = por %p62, %p63
    %p65 = scmp.ne.s32.totalorder %s57, %s59
    %p66 = scmp.eq.s32.totalorder %s14, 1
    %p67 = por %p65, %p66
    %p68 = scmp.ne.s32.totalorder %s59, %s60
    %p69 = scmp.eq.s32.totalorder %s14, 0
    %p70 = por %p68, %p69
    %p71 = scmp.ne.s32.totalorder %s59, %s60
    %p72 = scmp.eq.s32.totalorder %s15, 1
    %p73 = por %p71, %p72
    %p75 = scmp.ne.s32.totalorder %s60, %s74
    %p76 = scmp.eq.s32.totalorder %s15, 0
    %p77 = por %p75, %p76
    %s79 = sadd.s32 %s78, 1
    %p82 = scmp.eq.s32.totalorder %s9, 1
    %p83 = scmp.ne.s32.totalorder %s78, %s80
    %p84 = scmp.eq.s32.totalorder %s9, 0
    %p85 = por %p83, %p84
    %p86 = scmp.ne.s32.totalorder %s78, %s80
    %p87 = scmp.eq.s32.totalorder %s14, 1
    %p88 = por %p86, %p87
    %p89 = scmp.ne.s32.totalorder %s80, %s81
    %p90 = scmp.eq.s32.totalorder %s14, 0
    %p91 = por %p89, %p90
    %p92 = scmp.ne.s32.totalorder %s80, %s81
    %p93 = scmp.eq.s32.totalorder %s15, 1
    %p94 = por %p92, %p93
    %p96 = scmp.ne.s32.totalorder %s81, %s95
    %p97 = scmp.eq.s32.totalorder %s15, 0
    %p98 = por %p96, %p97
    %s99 = ssub.s32 %s16, %s28
    %s100 = ssub.s32 %s17, %s24
    %s101 = sor.u32 %s99, %s100
    %p102 = scmp.eq.s32.totalorder %s101, 0
    %s104 = sadd.s32 %s103, 1
    %s105 = scalar_select %p102, %s103, %s104
    %p108 = pneg %p102
    %p109 = scmp.eq.s32.totalorder %s9, 1
    %p110 = por %p108, %p109
    %p111 = scmp.ne.s32.totalorder %s103, %s106
    %p112 = scmp.eq.s32.totalorder %s9, 0
    %p113 = por %p111, %p112
    %p114 = scmp.ne.s32.totalorder %s103, %s106
    %p115 = scmp.eq.s32.totalorder %s14, 1
    %p116 = por %p114, %p115
    %p117 = scmp.ne.s32.totalorder %s106, %s107
    %p118 = scmp.eq.s32.totalorder %s14, 0
    %p119 = por %p117, %p118
    %p120 = scmp.ne.s32.totalorder %s106, %s107
    %p121 = scmp.eq.s32.totalorder %s15, 1
    %p122 = por %p120, %p121
    %p124 = scmp.ne.s32.totalorder %s107, %s123
    %p125 = scmp.eq.s32.totalorder %s15, 0
    %p126 = por %p124, %p125
    %p127 = scmp.le.s32.totalorder 1, %s9
    %p128 = scmp.lt.s32.totalorder %s9, 3
    %p129 = pnand %p127, %p128
    %p130 = pneg %p129
    // Predicated region
    $region9: #{tpu_custom_call.1} parent=5 // pred_check
      _
    $region10: #{tpu_custom_call.1} parent=5 // pred_check_branch
      %132 = sbr.rel (%p129) target = $region12
    $region11: #{tpu_custom_call.1} parent=5 // pred_region
      %s133 = ssub.s32 %s9, 1
      // Predicated region
      $region13: #{tpu_custom_call.1} parent=11 // pred_check
        %p134 = pneg %p70
      $region14: #{tpu_custom_call.1} parent=11 // pred_check_branch
        %136 = sbr.rel (%p134) target = $region16
      $region15: #{tpu_custom_call.1} parent=11 // pred_region
        _
      $region16: #{tpu_custom_call.1} parent=11 // pred_fallthru
        _
      // Predicated region
      $region17: #{tpu_custom_call.1} parent=11 // pred_check
        %p137 = pneg %p91
      $region18: #{tpu_custom_call.1} parent=11 // pred_check_branch
        %139 = sbr.rel (%p137) target = $region20
      $region19: #{tpu_custom_call.1} parent=11 // pred_region
        _
      $region20: #{tpu_custom_call.1} parent=11 // pred_fallthru
        _
    $region12: #{tpu_custom_call.1} parent=5 // pred_fallthru
      _
    %p140 = scmp.lt.s32.totalorder %s9, 2
    // Predicated region
    $region21: #{tpu_custom_call.1} parent=5 // pred_check
      %p141 = pneg %p140
    $region22: #{tpu_custom_call.1} parent=5 // pred_check_branch
      %143 = sbr.rel (%p141) target = $region24
    $region23: #{tpu_custom_call.1} parent=5 // pred_region
      // Predicated region
      $region25: #{tpu_custom_call.1} parent=23 // pred_check
        %p144 = pneg %p43
      $region26: #{tpu_custom_call.1} parent=23 // pred_check_branch
        %146 = sbr.rel (%p144) target = $region28
      $region27: #{tpu_custom_call.1} parent=23 // pred_region
        %p147 = scmp.lt.s32.totalorder %s16, 1
        %s148 = scalar_select %p147, %s16, 1
        %p149 = scmp.lt.s32.totalorder %s17, 0
        %s150 = scalar_select %p149, %s17, 0
        %s151 = sadd.s32 %s150, %s148
        %s152 = smul.addr %s151, 4
        %s153 = scalar_lea.vmem %s0, %s152
      $region28: #{tpu_custom_call.1} parent=23 // pred_fallthru
        _
    $region24: #{tpu_custom_call.1} parent=5 // pred_fallthru
      _
    %p154 = scmp.le.s32.totalorder 1, %s9
    %p155 = scmp.lt.s32.totalorder %s9, 3
    %p156 = pnand %p154, %p155
    %p157 = pneg %p156
    // Predicated region
    $region29: #{tpu_custom_call.1} parent=5 // pred_check
      _
    $region30: #{tpu_custom_call.1} parent=5 // pred_check_branch
      %159 = sbr.rel (%p156) target = $region32
    $region31: #{tpu_custom_call.1} parent=5 // pred_region
      %s160 = ssub.s32 %s9, 1
      %p161 = scmp.lt.s32.totalorder %s18, 1
      %s162 = scalar_select %p161, %s18, 1
      %p163 = scmp.lt.s32.totalorder %s19, 0
      %s164 = scalar_select %p163, %s19, 0
      %s165 = sadd.s32 %s164, %s162
      %s166 = smul.addr %s165, 4
      %s167 = scalar_lea.vmem %s0, %s166
      %p168 = pneg %p49
      %p169 = pneg %p46
      %p170 = pneg %p70
      %p171 = pneg %p67
      %p172 = pneg %p91
      %p173 = pneg %p88
      %p174 = pneg %p119
      %p175 = pneg %p116
      %p176 = scmp.lt.s32.totalorder %s18, 1
      %s177 = scalar_select %p176, %s18, 1
      %p178 = scmp.lt.s32.totalorder %s19, 0
      %s179 = scalar_select %p178, %s19, 0
      %s180 = smul.addr %s177, 4
      %s181 = sadd.s32 %s179, %s180
      %s182 = smul.addr %s181, 8
      %s183 = scalar_lea.vmem %s3, %s182
      %p184 = scmp.lt.s32.totalorder %s18, 1
      %s185 = scalar_select %p184, %s18, 1
      %p186 = scmp.lt.s32.totalorder %s19, 0
      %s187 = scalar_select %p186, %s19, 0
      %s188 = sadd.s32 %s187, %s185
      %s189 = smul.addr %s188, 4
      %s190 = scalar_lea.vmem %s0, %s189
      %p191 = scmp.lt.s32.totalorder %s18, 1
      %s192 = scalar_select %p191, %s18, 1
      %p193 = scmp.lt.s32.totalorder %s19, 0
      %s194 = scalar_select %p193, %s19, 0
      %s195 = smul.addr %s192, 4
      %s196 = sadd.s32 %s194, %s195
      %s197 = smul.addr %s196, 8
      %s198 = scalar_lea.vmem %s3, %s197
      %v199 = vld [vmem:[%s190] sm:$0x7]
      %v200 = vld [vmem:[%s1] sm:$0xff]
      %v201 = vld [vmem:[%s1 + $0x8] sm:$0xff]
      %v202 = vld [vmem:[%s1 + $0x10] sm:$0xff]
      %v203 = vld [vmem:[%s1 + $0x18] sm:$0xff]
      %205 = vset.pattern.permute.xlu0 0
      %206 = vperm.xlu0 %205, %v200
      %v207 = vpop.permute.xlu0 %206
      %210 = vset.pattern.permute.xlu0 0
      %211 = vperm.xlu0 %210, %v201
      %v212 = vpop.permute.xlu0 %211
      %215 = vset.pattern.permute.xlu0 0
      %216 = vperm.xlu0 %215, %v202
      %v217 = vpop.permute.xlu0 %216
      %220 = vset.pattern.permute.xlu0 0
      %221 = vperm.xlu0 %220, %v203
      %v222 = vpop.permute.xlu0 %221
      %v224 = vlaneseq
      %v225 = vshrl.u32 %v224, 7
      %v226 = vsub.s32 0, %v225
      %v227 = vrot.slane %v199, %v226
      %v228 = vmul.f32 %v207, %v227
      %v229 = vmul.f32 %v212, %v227
      %v230 = vmul.f32 %v217, %v227
      %v231 = vmul.f32 %v222, %v227
      %232 = vset.pattern.permute.xlu0 1
      %233 = vperm.xlu0 %232, %v200
      %v234 = vpop.permute.xlu0 %233
      %236 = vset.pattern.permute.xlu0 1
      %237 = vperm.xlu0 %236, %v201
      %v238 = vpop.permute.xlu0 %237
      %240 = vset.pattern.permute.xlu0 1
      %241 = vperm.xlu0 %240, %v202
      %v242 = vpop.permute.xlu0 %241
      %244 = vset.pattern.permute.xlu0 1
      %245 = vperm.xlu0 %244, %v203
      %v246 = vpop.permute.xlu0 %245
      %v248 = vlaneseq
      %v249 = vshrl.u32 %v248, 7
      %v250 = vsub.s32 1, %v249
      %v251 = vrot.slane %v199, %v250
      %v252 = vmul.f32 %v234, %v251
      %v253 = vmul.f32 %v238, %v251
      %v254 = vmul.f32 %v242, %v251
      %v255 = vmul.f32 %v246, %v251
      %v256 = vadd.f32 %v228, %v252
      %v257 = vadd.f32 %v229, %v253
      %v258 = vadd.f32 %v230, %v254
      %v259 = vadd.f32 %v231, %v255
      %260 = vset.pattern.permute.xlu0 2
      %261 = vperm.xlu0 %260, %v200
      %v262 = vpop.permute.xlu0 %261
      %264 = vset.pattern.permute.xlu0 2
      %265 = vperm.xlu0 %264, %v201
      %v266 = vpop.permute.xlu0 %265
      %268 = vset.pattern.permute.xlu0 2
      %269 = vperm.xlu0 %268, %v202
      %v270 = vpop.permute.xlu0 %269
      %272 = vset.pattern.permute.xlu0 2
      %273 = vperm.xlu0 %272, %v203
      %v274 = vpop.permute.xlu0 %273
      %v276 = vlaneseq
      %v277 = vshrl.u32 %v276, 7
      %v278 = vsub.s32 2, %v277
      %v279 = vrot.slane %v199, %v278
      %v280 = vmul.f32 %v262, %v279
      %v281 = vmul.f32 %v266, %v279
      %v282 = vmul.f32 %v270, %v279
      %v283 = vmul.f32 %v274, %v279
      %v284 = vadd.f32 %v256, %v280
      %v285 = vadd.f32 %v257, %v281
      %v286 = vadd.f32 %v258, %v282
      %v287 = vadd.f32 %v259, %v283
      %v288 = vld [vmem:[%s2] sm:$0xff]
      %v289 = vld [vmem:[%s2 + $0x8] sm:$0xff]
      %v290 = vld [vmem:[%s2 + $0x10] sm:$0xff]
      %v291 = vld [vmem:[%s2 + $0x18] sm:$0xff]
      %293 = vset.pattern.permute.xlu0 0
      %294 = vperm.xlu0 %293, %v288
      %v295 = vpop.permute.xlu0 %294
      %298 = vset.pattern.permute.xlu0 0
      %299 = vperm.xlu0 %298, %v289
      %v300 = vpop.permute.xlu0 %299
      %303 = vset.pattern.permute.xlu0 0
      %304 = vperm.xlu0 %303, %v290
      %v305 = vpop.permute.xlu0 %304
      %308 = vset.pattern.permute.xlu0 0
      %309 = vperm.xlu0 %308, %v291
      %v310 = vpop.permute.xlu0 %309
      %v312 = vadd.f32 %v284, %v295
      %v313 = vadd.f32 %v285, %v300
      %v314 = vadd.f32 %v286, %v305
      %v315 = vadd.f32 %v287, %v310
      %v316 = vmax.f32 %v312, 0.0
      %v317 = vmax.f32 %v313, 0.0
      %v318 = vmax.f32 %v314, 0.0
      %v319 = vmax.f32 %v315, 0.0
      %vm320 = vcmask 130048
      %321 = vst.msk [vmem:[%s198] sm:$0xff] %vm320, %v316
      %322 = vst.msk [vmem:[%s198 + $0x8] sm:$0xff] %vm320, %v317
      %323 = vst.msk [vmem:[%s198 + $0x10] sm:$0xff] %vm320, %v318
      %324 = vst.msk [vmem:[%s198 + $0x18] sm:$0xff] %vm320, %v319
      %p325 = scmp.lt.s32.totalorder %s18, 1
      %s326 = scalar_select %p325, %s18, 1
      %p327 = scmp.lt.s32.totalorder %s19, 0
      %s328 = scalar_select %p327, %s19, 0
      %s329 = smul.addr %s326, 4
      %s330 = sadd.s32 %s328, %s329
      %s331 = smul.addr %s330, 8
      %s332 = scalar_lea.vmem %s3, %s331
      // Predicated region
      $region33: #{tpu_custom_call.1} parent=31 // pred_check
        %p333 = pneg %p116
      $region34: #{tpu_custom_call.1} parent=31 // pred_check_branch
        %335 = sbr.rel (%p333) target = $region36
      $region35: #{tpu_custom_call.1} parent=31 // pred_region
        _
      $region36: #{tpu_custom_call.1} parent=31 // pred_fallthru
        _
    $region32: #{tpu_custom_call.1} parent=5 // pred_fallthru
      _
    %p336 = scmp.le.s32.totalorder 2, %s9
    // Predicated region
    $region37: #{tpu_custom_call.1} parent=5 // pred_check
      %p337 = pneg %p336
    $region38: #{tpu_custom_call.1} parent=5 // pred_check_branch
      %339 = sbr.rel (%p337) target = $region40
    $region39: #{tpu_custom_call.1} parent=5 // pred_region
      %s340 = ssub.s32 %s9, 2
      // Predicated region
      $region41: #{tpu_custom_call.1} parent=39 // pred_check
        %p341 = pneg %p122
      $region42: #{tpu_custom_call.1} parent=39 // pred_check_branch
        %343 = sbr.rel (%p341) target = $region44
      $region43: #{tpu_custom_call.1} parent=39 // pred_region
        %p344 = scmp.lt.s32.totalorder %s20, 1
        %s345 = scalar_select %p344, %s20, 1
        %p346 = scmp.lt.s32.totalorder %s21, 0
        %s347 = scalar_select %p346, %s21, 0
        %s348 = smul.addr %s345, 4
        %s349 = sadd.s32 %s347, %s348
        %s350 = smul.addr %s349, 8
        %s351 = scalar_lea.vmem %s3, %s350
      $region44: #{tpu_custom_call.1} parent=39 // pred_fallthru
        _
    $region40: #{tpu_custom_call.1} parent=5 // pred_fallthru
      _
  $region6: #{tpu_custom_call.1} parent=0 // loop_footer
    %s13 = sadd.s32 1, %s9
  $region7: #{tpu_custom_call.1} parent=0 // loop_footer_branch
    %8 = sbr.rel target = $region3
  $region8: #{tpu_custom_call.1} parent=0 // loop_exit
    _

</llo_original>
